<compile_context>
chip_gen: v7x
topology: tpu7x:2x2x1
jax: 0.10.0
libtpu: 0.0.40
codegen_flags: <defaults>
</compile_context>

<pallas_src>
import functools

import jax
import jax.numpy as jnp
from jax.experimental import pallas as pl
from jax.experimental.pallas import tpu as pltpu


def _round_up(x, m):
    return ((x + m - 1) // m) * m


def _vmem_capacity_bytes():
    try:
        cap = int(pltpu.get_tpu_info().vmem_capacity_bytes)
        if cap > 0:
            return cap
    except Exception:
        pass
    return 64 * 1024 * 1024  # conservative fallback: v7x per-TensorCore VMEM


def _block_spec(shape, index_map, buffers=None):
    """BlockSpec with optional pipeline buffer-count override (safe fallback)."""
    if buffers is not None:
        try:
            return pl.BlockSpec(shape, index_map,
                                pipeline_mode=pl.Buffered(buffers))
        except Exception:
            pass
    return pl.BlockSpec(shape, index_map)


# --------------------------------------------------------------------------
# Dense path: full-Lk K/V residency, grid = (batch, Lq tiles)
# --------------------------------------------------------------------------
def _make_dense_kernel(inv_temperature, emit_attn, compute_dtype):
    def kernel(q_ref, k_ref, v_ref, mask_ref, out_ref, *attn_refs):
        # Blocks: q (1,TQ,D), k (1,Lk,D), v (1,Lk,Dv), mask (1,TQ,Lk) int8.
        # Fold temperature into Q: one (TQ,D) VPU multiply instead of (TQ,Lk).
        q = q_ref[0] * inv_temperature
        k = k_ref[0]
        v = v_ref[0]
        m = mask_ref[0]
        if compute_dtype is not None:
            q = q.astype(compute_dtype)
            k = k.astype(compute_dtype)
            v = v.astype(compute_dtype)

        # scores = (q/t) @ k^T; contract last dims so MXU consumes K directly.
        scores = jax.lax.dot_general(
            q, k, dimension_numbers=(((1,), (1,)), ((), ())),
            preferred_element_type=jnp.float32)

        # masked_fill(mask, -inf)
        scores = jnp.where(m != 0, -jnp.inf, scores)

        # Softmax over last dim; fully-masked rows -> all-zero output (matches
        # torch.where(isnan, 0, softmax)) without generating NaNs.
        row_max = jnp.max(scores, axis=-1, keepdims=True)
        all_masked = row_max == -jnp.inf
        row_max = jnp.where(all_masked, 0.0, row_max)
        p = jnp.exp(scores - row_max)               # masked lanes -> 0
        denom = jnp.sum(p, axis=-1, keepdims=True)
        denom = jnp.where(all_masked, 1.0, denom)   # avoid 0/0 (rows all 0)
        attn = p * pl.reciprocal(denom, approx=False)

        out = jax.lax.dot_general(
            attn.astype(v.dtype), v,
            dimension_numbers=(((1,), (0,)), ((), ())),
            preferred_element_type=jnp.float32)

        out_ref[0] = out.astype(out_ref.dtype)
        if emit_attn:
            attn_refs[0][0] = attn.astype(attn_refs[0].dtype)

    return kernel


# --------------------------------------------------------------------------
# Flash path: Lk-tiled online softmax, grid = (batch, Lq tiles, Lk tiles)
# Used for return_attn=False when full-Lk residency does not fit VMEM
# (the critical case on v7x's 64 MiB) or when forced via block_k.
# --------------------------------------------------------------------------
def _make_flash_kernel(inv_temperature, compute_dtype):
    def kernel(q_ref, k_ref, v_ref, mask_ref, out_ref, m_sc, l_sc, acc_sc):
        kv = pl.program_id(2)

        @pl.when(kv == 0)
        def _():
            m_sc[...] = jnp.full(m_sc.shape, -jnp.inf, dtype=m_sc.dtype)
            l_sc[...] = jnp.zeros(l_sc.shape, dtype=l_sc.dtype)
            acc_sc[...] = jnp.zeros(acc_sc.shape, dtype=acc_sc.dtype)

        q = q_ref[0] * inv_temperature
        k = k_ref[0]
        v = v_ref[0]
        m = mask_ref[0]
        if compute_dtype is not None:
            q = q.astype(compute_dtype)
            k = k.astype(compute_dtype)
            v = v.astype(compute_dtype)

        s = jax.lax.dot_general(
            q, k, dimension_numbers=(((1,), (1,)), ((), ())),
            preferred_element_type=jnp.float32)
        s = jnp.where(m != 0, -jnp.inf, s)

        m_prev = m_sc[...]
        m_new = jnp.maximum(m_prev, jnp.max(s, axis=-1, keepdims=True))
        # Keep the running max finite for fully-masked-so-far rows so no NaNs
        # are produced; those rows carry l == 0 and acc == 0.
        m_safe = jnp.where(m_new == -jnp.inf, 0.0, m_new)
        alpha = jnp.exp(m_prev - m_safe)            # m_prev == -inf -> 0
        p = jnp.exp(s - m_safe)                     # masked lanes -> 0
        l_sc[...] = alpha * l_sc[...] + jnp.sum(p, axis=-1, keepdims=True)
        pv = jax.lax.dot_general(
            p.astype(v.dtype), v,
            dimension_numbers=(((1,), (0,)), ((), ())),
            preferred_element_type=jnp.float32)
        acc_sc[...] = alpha * acc_sc[...] + pv
        m_sc[...] = m_new

        @pl.when(kv == pl.num_programs(2) - 1)
        def _():
            denom = jnp.where(l_sc[...] == 0.0, 1.0, l_sc[...])
            out_ref[0] = (acc_sc[...] *
                          pl.reciprocal(denom, approx=False)).astype(out_ref.dtype)

    return kernel


def self_attention(q, k, v, mask, temperature, *,
                   block_q=256, block_k=None, return_attn=True,
                   attn_dtype=jnp.float32, compute_dtype=None):
    """Pallas TPU implementation of SelfAttention.forward.

    Args:
      q:    (B, Lq, D)  float32
      k:    (B, Lk, D)  float32
      v:    (B, Lk, Dv) float32
      mask: (B, Lq, Lk) bool / int (nonzero == masked out)
      temperature: python float scalar
      block_q: target Lq tile size (auto-shrunk, multiples of 32)
      block_k: if set (and return_attn=False), force the flash Lk-tiled path
        with this Lk tile size (rounded to a multiple of 128)
      return_attn: if False, skip emitting the (B, Lq, Lk) attention matrix
      attn_dtype: dtype of the returned attention matrix (f32 default; bf16
        halves the dominant HBM writeback at ~1e-3 relative error)
      compute_dtype: optional bf16 for the MXU matmuls (v6e/v7x bf16-native)

    Returns:
      (output, attn) if return_attn else output
    """
    B, Lq, D = q.shape
    _, Lk, _ = k.shape
    Dv = v.shape[-1]

    cap = _vmem_capacity_bytes()
    budget = int(cap * 0.75)          # tiling budget (e.g. ~96 MiB on v5e/v6e)
    vmem_cap = int(cap * 0.90)        # leave compiler headroom

    # Lane-dense output tiles: pad Dv / Lk up to multiples of 128 if needed.
    Dv_p = _round_up(Dv, 128)
    Lk_full = _round_up(Lk, 128)

    attn_bytes = jnp.dtype(attn_dtype).itemsize if return_attn else 0

    # Dense-path footprint (double-buffered I/O except possibly K/V) -- only
    # budgets the attn tile / third live score copy when it is actually emitted.
    kv_bytes = 4 * Lk_full * (D + Dv_p)
    single_buffer_kv = (2 * kv_bytes > budget // 2)
    kv_bufs = 1 if single_buffer_kv else 2

    def dense_footprint(tq_):
        io = (2 * (4 * tq_ * D                      # q tile
                   + 1 * tq_ * Lk_full              # int8 mask tile
                   + 4 * tq_ * Dv_p                 # out tile
                   + attn_bytes * tq_ * Lk_full)    # attn tile (if emitted)
              + kv_bufs * kv_bytes)                 # K + V tiles
        live = (3 if return_attn else 2) * 4 * tq_ * Lk_full
        return io + live

    tq = _round_up(min(block_q, _round_up(Lq, 32)), 32)
    while tq > 32 and dense_footprint(tq) > budget:
        tq = max(32, _round_up(tq // 2, 32))

    use_flash = (not return_attn) and (block_k is not None
                                       or dense_footprint(tq) > budget)
    # TODO(synk): when return_attn=True and the dense footprint still exceeds
    # the budget (very long Lk), an Lk-tiled variant that streams attn blocks
    # back per k-step would be needed; not implemented here.
    # TODO(synk): bit-pack the mask (8 keys/byte) or generate structural masks
    # in-kernel from per-row lengths to cut the remaining O(Lq*Lk) HBM stream.

    if use_flash:
        bk = block_k if block_k is not None else 512
        bk = max(128, _round_up(min(bk, _round_up(Lk, 128)), 128))
        Lk_p = _round_up(Lk, bk)

        def flash_footprint(tq_):
            io = 2 * (4 * tq_ * D + 4 * bk * D + 4 * bk * Dv_p
                      + 1 * tq_ * bk + 4 * tq_ * Dv_p)
            scratch = 4 * tq_ * (Dv_p + 2)
            live = 2 * 4 * tq_ * bk
            return io + scratch + live

        tq = _round_up(min(block_q, _round_up(Lq, 32)), 32)
        while tq > 32 and flash_footprint(tq) > budget:
            tq = max(32, _round_up(tq // 2, 32))
        fp = flash_footprint(tq)
    else:
        Lk_p = Lk_full
        fp = dense_footprint(tq)

    Lq_p = _round_up(Lq, tq)
    vmem_limit = int(min(max(int(fp * 1.25), 32 * 1024 * 1024), vmem_cap))

    # int8 mask straight into the kernel; padded query rows / key columns are
    # marked masked so they contribute exactly zero.
    mask_i8 = mask.astype(jnp.int8)
    if Lq_p != Lq or Lk_p != Lk:
        mask_i8 = jnp.pad(mask_i8, ((0, 0), (0, Lq_p - Lq), (0, Lk_p - Lk)),
                          constant_values=1)
    if Lq_p != Lq:
        q = jnp.pad(q, ((0, 0), (0, Lq_p - Lq), (0, 0)))
    if Lk_p != Lk:
        k = jnp.pad(k, ((0, 0), (0, Lk_p - Lk), (0, 0)))
    if Lk_p != Lk or Dv_p != Dv:
        v = jnp.pad(v, ((0, 0), (0, Lk_p - Lk), (0, Dv_p - Dv)))

    inv_temperature = 1.0 / float(temperature)

    if use_flash:
        kernel = _make_flash_kernel(inv_temperature, compute_dtype)
        out = pl.pallas_call(
            kernel,
            out_shape=jax.ShapeDtypeStruct((B, Lq_p, Dv_p), q.dtype),
            grid_spec=pltpu.PrefetchScalarGridSpec(
                num_scalar_prefetch=0,
                grid=(B, Lq_p // tq, Lk_p // bk),
                in_specs=[
                    pl.BlockSpec((1, tq, D), lambda b, i, j: (b, i, 0)),
                    pl.BlockSpec((1, bk, D), lambda b, i, j: (b, j, 0)),
                    pl.BlockSpec((1, bk, Dv_p), lambda b, i, j: (b, j, 0)),
                    pl.BlockSpec((1, tq, bk), lambda b, i, j: (b, i, j)),
                ],
                out_specs=pl.BlockSpec((1, tq, Dv_p), lambda b, i, j: (b, i, 0)),
                scratch_shapes=[
                    pltpu.VMEM((tq, 1), jnp.float32),      # running max
                    pltpu.VMEM((tq, 1), jnp.float32),      # running denom
                    pltpu.VMEM((tq, Dv_p), jnp.float32),   # running acc
                ],
            ),
            compiler_params=pltpu.CompilerParams(
                dimension_semantics=("parallel", "parallel", "arbitrary"),
                vmem_limit_bytes=vmem_limit,
            ),
        )(q, k, v, mask_i8)
        return out[:, :Lq, :Dv]

    # Dense path.
    # TODO(synk): on v7x with B == 1, megacore-sharding the i axis makes both
    # TensorCores keep/fetch the same full K/V; CMEM/VMEM_SHARED sharing would
    # avoid the duplication.
    kernel = _make_dense_kernel(inv_temperature, return_attn, compute_dtype)
    out_shapes = [jax.ShapeDtypeStruct((B, Lq_p, Dv_p), q.dtype)]
    out_specs = [pl.BlockSpec((1, tq, Dv_p), lambda b, i: (b, i, 0))]
    if return_attn:
        out_shapes.append(jax.ShapeDtypeStruct((B, Lq_p, Lk_p), attn_dtype))
        out_specs.append(pl.BlockSpec((1, tq, Lk_p), lambda b, i: (b, i, 0)))

    kv_buffers = 1 if single_buffer_kv else None   # K/V change only per batch
    results = pl.pallas_call(
        kernel,
        out_shape=tuple(out_shapes),
        grid_spec=pltpu.PrefetchScalarGridSpec(
            num_scalar_prefetch=0,
            grid=(B, Lq_p // tq),
            in_specs=[
                pl.BlockSpec((1, tq, D), lambda b, i: (b, i, 0)),
                _block_spec((1, Lk_p, D), lambda b, i: (b, 0, 0),
                            buffers=kv_buffers),
                _block_spec((1, Lk_p, Dv_p), lambda b, i: (b, 0, 0),
                            buffers=kv_buffers),
                pl.BlockSpec((1, tq, Lk_p), lambda b, i: (b, i, 0)),
            ],
            out_specs=out_specs,
        ),
        compiler_params=pltpu.CompilerParams(
            dimension_semantics=("parallel", "parallel"),
            vmem_limit_bytes=vmem_limit,
        ),
    )(q, k, v, mask_i8)

    out = results[0][:, :Lq, :Dv]
    if return_attn:
        attn = results[1][:, :Lq, :Lk]
        return out, attn
    return out


def _reference(q, k, v, mask, temperature):
    # Pure-JAX reference of the PyTorch forward.
    attn = jnp.einsum("bqd,bkd->bqk", q, k) / temperature
    attn = jnp.where(mask, -jnp.inf, attn)
    attn = jax.nn.softmax(attn, axis=2)
    attn = jnp.where(jnp.isnan(attn), jnp.zeros_like(attn), attn)
    out = jnp.einsum("bqk,bkd->bqd", attn, v)
    return out, attn


if __name__ == "__main__":
    key = jax.random.PRNGKey(0)
    kq, kk, kv_, km = jax.random.split(key, 4)

    B, Lq, Lk, D, Dv = 2, 8, 8, 32, 32
    temperature = float(D) ** 0.5

    q = jax.random.normal(kq, (B, Lq, D), dtype=jnp.float32)
    k = jax.random.normal(kk, (B, Lk, D), dtype=jnp.float32)
    v = jax.random.normal(kv_, (B, Lk, Dv), dtype=jnp.float32)
    # Random boolean mask; fully mask one query row to exercise the
    # torch NaN -> 0 path.
    mask = jax.random.bernoulli(km, p=0.3, shape=(B, Lq, Lk))
    mask = mask.at[0, 3, :].set(True)

    out_ref, attn_ref = _reference(q, k, v, mask, temperature)

    # Dense path, f32 attn (exact parity with the torch module).
    out, attn = self_attention(q, k, v, mask, temperature)
    out = jax.block_until_ready(out)
    attn = jax.block_until_ready(attn)
    assert jnp.allclose(out, out_ref, atol=1e-5, rtol=1e-5), "output mismatch"
    assert jnp.allclose(attn, attn_ref, atol=1e-5, rtol=1e-5), "attn mismatch"

    # bf16 attn writeback knob (halves the dominant HBM stream).
    out_b, attn_b = self_attention(q, k, v, mask, temperature,
                                   attn_dtype=jnp.bfloat16)
    jax.block_until_ready(out_b)
    assert jnp.allclose(out_b, out_ref, atol=1e-5, rtol=1e-5), "bf16-attn out mismatch"
    assert jnp.allclose(attn_b.astype(jnp.float32), attn_ref,
                        atol=1e-2, rtol=1e-2), "bf16 attn mismatch"

    # Output-only dense path (drops the attn writeback entirely).
    out_only = jax.block_until_ready(
        self_attention(q, k, v, mask, temperature, return_attn=False))
    assert jnp.allclose(out_only, out_ref, atol=1e-5, rtol=1e-5), "out-only mismatch"

    # Flash (Lk-tiled online-softmax) path, forced via block_k, with a ragged
    # Lk spanning several k tiles and a fully-masked row.
    B2, Lq2, Lk2 = 2, 40, 300
    q2 = jax.random.normal(kq, (B2, Lq2, D), dtype=jnp.float32)
    k2 = jax.random.normal(kk, (B2, Lk2, D), dtype=jnp.float32)
    v2 = jax.random.normal(kv_, (B2, Lk2, Dv), dtype=jnp.float32)
    mask2 = jax.random.bernoulli(km, p=0.3, shape=(B2, Lq2, Lk2))
    mask2 = mask2.at[1, 5, :].set(True)
    out2 = jax.block_until_ready(
        self_attention(q2, k2, v2, mask2, temperature,
                       return_attn=False, block_k=128))
    out2_ref, _ = _reference(q2, k2, v2, mask2, temperature)
    assert jnp.allclose(out2, out2_ref, atol=1e-4, rtol=1e-4), "flash mismatch"

    print("KERNEL_OK")
</pallas_src>

<mosaic_0001>
module attributes {stable_mosaic.version = 11 : i64} {
  func.func @kernel(%arg0: i32, %arg1: i32, %arg2: memref<1x32x32xf32, #tpu.memory_space<vmem>>, %arg3: memref<1x128x32xf32, #tpu.memory_space<vmem>>, %arg4: memref<1x128x128xf32, #tpu.memory_space<vmem>>, %arg5: memref<1x32x128xi8, #tpu.memory_space<vmem>>, %arg6: memref<1x32x128xf32, #tpu.memory_space<vmem>>, %arg7: memref<1x32x128xf32, #tpu.memory_space<vmem>>) attributes {dimension_semantics = [#tpu.dimension_semantics<parallel>, #tpu.dimension_semantics<parallel>], iteration_bounds = array<i64: 2, 1>, scalar_prefetch = 0 : i64, scratch_operands = 0 : i64, tpu.core_type = #tpu.core_type<tc>, window_params = [{transform_indices = @transform_0, window_bounds = array<i64: 1, 32, 32>}, {transform_indices = @transform_1, window_bounds = array<i64: 1, 128, 32>}, {transform_indices = @transform_2, window_bounds = array<i64: 1, 128, 128>}, {transform_indices = @transform_3, window_bounds = array<i64: 1, 32, 128>}, {transform_indices = @transform_4, window_bounds = array<i64: 1, 32, 128>}, {transform_indices = @transform_5, window_bounds = array<i64: 1, 32, 128>}]} {
    %c0 = arith.constant 0 : index
    %c0_0 = arith.constant 0 : index
    %c0_1 = arith.constant 0 : index
    %0 = vector.load %arg2[%c0, %c0_0, %c0_1] : memref<1x32x32xf32, #tpu.memory_space<vmem>>, vector<1x32x32xf32>
    %1 = vector.shape_cast %0 : vector<1x32x32xf32> to vector<32x32xf32>
    %cst = arith.constant 0.176776692 : f32
    %2 = vector.broadcast %cst : f32 to vector<32x32xf32>
    %3 = arith.mulf %1, %2 : vector<32x32xf32>
    %c0_2 = arith.constant 0 : index
    %c0_3 = arith.constant 0 : index
    %c0_4 = arith.constant 0 : index
    %4 = vector.load %arg3[%c0_2, %c0_3, %c0_4] : memref<1x128x32xf32, #tpu.memory_space<vmem>>, vector<1x128x32xf32>
    %5 = vector.shape_cast %4 : vector<1x128x32xf32> to vector<128x32xf32>
    %c0_5 = arith.constant 0 : index
    %c0_6 = arith.constant 0 : index
    %c0_7 = arith.constant 0 : index
    %6 = vector.load %arg4[%c0_5, %c0_6, %c0_7] : memref<1x128x128xf32, #tpu.memory_space<vmem>>, vector<1x128x128xf32>
    %7 = vector.shape_cast %6 : vector<1x128x128xf32> to vector<128x128xf32>
    %c0_8 = arith.constant 0 : index
    %c0_9 = arith.constant 0 : index
    %c0_10 = arith.constant 0 : index
    %8 = vector.load %arg5[%c0_8, %c0_9, %c0_10] : memref<1x32x128xi8, #tpu.memory_space<vmem>>, vector<1x32x128xi8>
    %9 = vector.shape_cast %8 : vector<1x32x128xi8> to vector<32x128xi8>
    %cst_11 = arith.constant dense<0.000000e+00> : vector<32x128xf32>
    %10 = tpu.matmul %3, %5, %cst_11 {dimension_numbers = #tpu.dot_dimension_numbers<[1], [1], [0], [0], [0, 0, 1, 0], [], []>} : vector<32x32xf32>, vector<128x32xf32>, vector<32x128xf32> -> vector<32x128xf32>
    %c0_i8 = arith.constant 0 : i8
    %11 = vector.broadcast %c0_i8 : i8 to vector<32x128xi8>
    %12 = arith.cmpi ne, %9, %11 : vector<32x128xi8>
    %cst_12 = arith.constant 0xFF800000 : f32
    %13 = vector.broadcast %cst_12 : f32 to vector<32x128xf32>
    %14 = arith.select %12, %13, %10 : vector<32x128xi1>, vector<32x128xf32>
    %cst_13 = arith.constant dense<0xFF800000> : vector<32xf32>
    %15 = vector.multi_reduction <maximumf>, %14, %cst_13 [1] : vector<32x128xf32> to vector<32xf32>
    %16 = vector.shape_cast %15 : vector<32xf32> to vector<32x1xf32>
    %cst_14 = arith.constant 0xFF800000 : f32
    %17 = vector.broadcast %cst_14 : f32 to vector<32x1xf32>
    %18 = arith.cmpf oeq, %16, %17 : vector<32x1xf32>
    %cst_15 = arith.constant 0.000000e+00 : f32
    %19 = vector.broadcast %cst_15 : f32 to vector<32x1xf32>
    %20 = arith.select %18, %19, %16 : vector<32x1xi1>, vector<32x1xf32>
    %21 = vector.broadcast %20 : vector<32x1xf32> to vector<32x128xf32>
    %22 = arith.subf %14, %21 : vector<32x128xf32>
    %23 = math.exp %22 : vector<32x128xf32>
    %cst_16 = arith.constant dense<0.000000e+00> : vector<32xf32>
    %24 = vector.multi_reduction <add>, %23, %cst_16 [1] : vector<32x128xf32> to vector<32xf32>
    %25 = vector.shape_cast %24 : vector<32xf32> to vector<32x1xf32>
    %cst_17 = arith.constant 1.000000e+00 : f32
    %26 = vector.broadcast %cst_17 : f32 to vector<32x1xf32>
    %27 = arith.select %18, %26, %25 : vector<32x1xi1>, vector<32x1xf32>
    %28 = tpu.reciprocal %27 : vector<32x1xf32> -> vector<32x1xf32>
    %29 = vector.broadcast %28 : vector<32x1xf32> to vector<32x128xf32>
    %30 = arith.mulf %23, %29 : vector<32x128xf32>
    %cst_18 = arith.constant dense<0.000000e+00> : vector<32x128xf32>
    %31 = tpu.matmul %30, %7, %cst_18 {dimension_numbers = #tpu.dot_dimension_numbers<[1], [0], [0], [1], [0, 0, 1, 1], [], []>} : vector<32x128xf32>, vector<128x128xf32>, vector<32x128xf32> -> vector<32x128xf32>
    %c0_19 = arith.constant 0 : index
    %c0_20 = arith.constant 0 : index
    %c0_21 = arith.constant 0 : index
    %32 = vector.load %arg6[%c0_19, %c0_20, %c0_21] : memref<1x32x128xf32, #tpu.memory_space<vmem>>, vector<1x32x128xf32>
    %33 = vector.shape_cast %32 : vector<1x32x128xf32> to vector<32x128xf32>
    %34 = vector.shape_cast %31 : vector<32x128xf32> to vector<1x32x128xf32>
    tpu.vector_store %arg6[%c0_19, %c0_20, %c0_21], %34 {strides = array<i32>} : memref<1x32x128xf32, #tpu.memory_space<vmem>>, vector<1x32x128xf32>,
    %c0_22 = arith.constant 0 : index
    %c0_23 = arith.constant 0 : index
    %c0_24 = arith.constant 0 : index
    %35 = vector.load %arg7[%c0_22, %c0_23, %c0_24] : memref<1x32x128xf32, #tpu.memory_space<vmem>>, vector<1x32x128xf32>
    %36 = vector.shape_cast %35 : vector<1x32x128xf32> to vector<32x128xf32>
    %37 = vector.shape_cast %30 : vector<32x128xf32> to vector<1x32x128xf32>
    tpu.vector_store %arg7[%c0_22, %c0_23, %c0_24], %37 {strides = array<i32>} : memref<1x32x128xf32, #tpu.memory_space<vmem>>, vector<1x32x128xf32>,
    return
  }
  func.func @transform_0(%arg0: i32, %arg1: i32) -> (i32, i32, i32) {
    %c0_i32 = arith.constant 0 : i32
    %c0_i32_0 = arith.constant 0 : i32
    return %arg0, %arg1, %c0_i32 : i32, i32, i32
  }
  func.func @transform_1(%arg0: i32, %arg1: i32) -> (i32, i32, i32) {
    %c0_i32 = arith.constant 0 : i32
    %c0_i32_0 = arith.constant 0 : i32
    %c0_i32_1 = arith.constant 0 : i32
    return %arg0, %c0_i32, %c0_i32_0 : i32, i32, i32
  }
  func.func @transform_2(%arg0: i32, %arg1: i32) -> (i32, i32, i32) {
    %c0_i32 = arith.constant 0 : i32
    %c0_i32_0 = arith.constant 0 : i32
    %c0_i32_1 = arith.constant 0 : i32
    return %arg0, %c0_i32, %c0_i32_0 : i32, i32, i32
  }
  func.func @transform_3(%arg0: i32, %arg1: i32) -> (i32, i32, i32) {
    %c0_i32 = arith.constant 0 : i32
    %c0_i32_0 = arith.constant 0 : i32
    return %arg0, %arg1, %c0_i32 : i32, i32, i32
  }
  func.func @transform_4(%arg0: i32, %arg1: i32) -> (i32, i32, i32) {
    %c0_i32 = arith.constant 0 : i32
    %c0_i32_0 = arith.constant 0 : i32
    return %arg0, %arg1, %c0_i32 : i32, i32, i32
  }
  func.func @transform_5(%arg0: i32, %arg1: i32) -> (i32, i32, i32) {
    %c0_i32 = arith.constant 0 : i32
    %c0_i32_0 = arith.constant 0 : i32
    return %arg0, %arg1, %c0_i32 : i32, i32, i32
  }
}

</mosaic_0001>

<llo_original>
// kernel: tpu_custom_call.1
$region0: #{tpu_custom_call.1}
  #allocation0 [shape = 'u32[]', space=smem, size = 0x4, offset = 0x4, fixed_abs, tag = 'smem constant byte address 0x4 - core index']
  #allocation1 [shape = 'u32[144,128]{1,0:T(1,128)}', space=vmem, size = 0x12000, scoped, tag = 'internal scratch']
  %s0 = inlined_call_operand.vmem [shape: f32[2,32,32], index: 0, kind: input, shape index: {}]
  %s1 = inlined_call_operand.vmem [shape: f32[2,128,32], index: 1, kind: input, shape index: {}]
  %s2 = inlined_call_operand.vmem [shape: f32[2,128,128], index: 2, kind: input, shape index: {}]
  %s3 = inlined_call_operand.hbm [shape: s8[2,32,128], index: 3, kind: input, shape index: {}]
  %s4 = inlined_call_operand.hbm [shape: f32[2,32,128], index: 4, kind: output, shape index: {0}]
  %s5 = inlined_call_operand.hbm [shape: f32[2,32,128], index: 5, kind: output, shape index: {1}]
  %6 = xla_tuple %s4, %s5
  %s7 = sld [smem:[#allocation0]]
  $region61: #{tpu_custom_call.1} parent=0
    _
  %s9 = ssub.s32 1, %s7
  %s10 = scalar_select 0, %s9, %s7
  $region1: #{tpu_custom_call.1} parent=0
    #allocation2 [shape = 'u8[8192]{0}', space=vmem, size = 0x2000, scoped, tag = 'input window, operand 3']
    #allocation3 [shape = 's32[2]{0}', space=sflag, size = 0x8, scoped, tag = 'scoped memory for tpu_custom_call.1']
    #allocation4 [shape = 's32[2]{0}', space=sflag, size = 0x8, scoped, tag = 'scoped memory for tpu_custom_call.1']
    #allocation5 [shape = 'u8[32768]{0}', space=vmem, size = 0x8000, scoped, tag = 'output window, operand 0']
    #allocation6 [shape = 'u8[32768]{0}', space=vmem, size = 0x8000, scoped, tag = 'output window, operand 1']
    #allocation7 [shape = 's32[2]{0}', space=sflag, size = 0x8, scoped, tag = 'scoped memory for tpu_custom_call.1']
    %11 = vsyncpa [#allocation3], 0
    %s12 = scalar_lea.sflag [#allocation3], 1
    %13 = vsyncpa %s12, 0
    %14 = vsyncpa [#allocation4], 0
    %s15 = scalar_lea.sflag [#allocation4], 1
    %16 = vsyncpa %s15, 0
    %17 = vsyncpa [#allocation7], 0
    %s18 = scalar_lea.sflag [#allocation7], 1
    %19 = vsyncpa %s18, 0
    loop: start=0, step=1, limit=4
    $region2: #{tpu_custom_call.1} parent=1 // loop_pre_header
      _
    $region3: #{tpu_custom_call.1} parent=1 // loop_header
      %s21 = sphi 0, %s25
      %p22 = scmp.ge.s32.totalorder %s21, 4
      %s28 = sphi 0, %s40
      %s29 = sphi 0, %s36
      %s30 = sphi 0, %s28
      %s31 = sphi 0, %s29
      %s32 = sphi 0, %s30
      %s33 = sphi 0, %s31
      %s45 = sphi 0, %s47
      %s48 = sphi 0, %s45
      %s49 = sphi 0, %s48
      %s65 = sphi 0, %s49
      %s71 = sphi 0, %s73
      %s74 = sphi 0, %s71
      %s75 = sphi 0, %s74
      %s91 = sphi 0, %s75
      %s97 = sphi 0, %s99
      %s100 = sphi 0, %s97
      %s101 = sphi 0, %s100
      %s117 = sphi 0, %s101
      %s125 = sphi 0, %s127
      %s128 = sphi 0, %s125
      %s129 = sphi 0, %s128
      %s145 = sphi 0, %s129
      %s153 = sphi 0, %s155
      %s156 = sphi 0, %s153
      %s157 = sphi 0, %s156
      %s173 = sphi 0, %s157
      %s181 = sphi 0, %s183
      %s184 = sphi 0, %s181
      %s185 = sphi 0, %s184
      %s201 = sphi 0, %s185
    $region4: #{tpu_custom_call.1} parent=1 // loop_header_branch
      %24 = sbr.rel (%p22) target = $region8
    $region5: #{tpu_custom_call.1} parent=1 // loop_body
      %s26 = ssub.s32 %s21, 1
      %s27 = ssub.s32 %s21, 2
      %s34 = sadd.s32 1, %s29
      %p35 = scmp.ge.s32.totalorder %s34, 1
      %s36 = scalar_select %p35, 0, %s34
      %s37 = sadd.s32 1, %s28
      %s38 = scalar_select %p35, %s37, %s28
      %p39 = scmp.ge.s32.totalorder %s38, 2
      %s40 = scalar_select %p39, 0, %s38
      %s41 = ssub.s32 %s28, %s40
      %s42 = ssub.s32 %s29, %s36
      %s43 = sor.u32 %s41, %s42
      %p44 = scmp.eq.s32.totalorder %s43, 0
      %s46 = sadd.s32 %s45, 1
      %s47 = scalar_select %p44, %s45, %s46
      %p50 = pneg %p44
      %p51 = scmp.eq.s32.totalorder %s21, 1
      %p52 = por %p50, %p51
      %p53 = scmp.ne.s32.totalorder %s45, %s48
      %p54 = scmp.eq.s32.totalorder %s21, 0
      %p55 = por %p53, %p54
      %p56 = scmp.ne.s32.totalorder %s45, %s48
      %p57 = scmp.eq.s32.totalorder %s26, 1
      %p58 = por %p56, %p57
      %p59 = scmp.ne.s32.totalorder %s48, %s49
      %p60 = scmp.eq.s32.totalorder %s26, 0
      %p61 = por %p59, %p60
      %p62 = scmp.ne.s32.totalorder %s48, %s49
      %p63 = scmp.eq.s32.totalorder %s27, 1
      %p64 = por %p62, %p63
      %p66 = scmp.ne.s32.totalorder %s49, %s65
      %p67 = scmp.eq.s32.totalorder %s27, 0
      %p68 = por %p66, %p67
      %s69 = ssub.s32 %s28, %s40
      %p70 = scmp.eq.s32.totalorder %s69, 0
      %s72 = sadd.s32 %s71, 1
      %s73 = scalar_select %p70, %s71, %s72
      %p76 = pneg %p70
      %p77 = scmp.eq.s32.totalorder %s21, 1
      %p78 = por %p76, %p77
      %p79 = scmp.ne.s32.totalorder %s71, %s74
      %p80 = scmp.eq.s32.totalorder %s21, 0
      %p81 = por %p79, %p80
      %p82 = scmp.ne.s32.totalorder %s71, %s74
      %p83 = scmp.eq.s32.totalorder %s26, 1
      %p84 = por %p82, %p83
      %p85 = scmp.ne.s32.totalorder %s74, %s75
      %p86 = scmp.eq.s32.totalorder %s26, 0
      %p87 = por %p85, %p86
      %p88 = scmp.ne.s32.totalorder %s74, %s75
      %p89 = scmp.eq.s32.totalorder %s27, 1
      %p90 = por %p88, %p89
      %p92 = scmp.ne.s32.totalorder %s75, %s91
      %p93 = scmp.eq.s32.totalorder %s27, 0
      %p94 = por %p92, %p93
      %s95 = ssub.s32 %s28, %s40
      %p96 = scmp.eq.s32.totalorder %s95, 0
      %s98 = sadd.s32 %s97, 1
      %s99 = scalar_select %p96, %s97, %s98
      %p102 = pneg %p96
      %p103 = scmp.eq.s32.totalorder %s21, 1
      %p104 = por %p102, %p103
      %p105 = scmp.ne.s32.totalorder %s97, %s100
      %p106 = scmp.eq.s32.totalorder %s21, 0
      %p107 = por %p105, %p106
      %p108 = scmp.ne.s32.totalorder %s97, %s100
      %p109 = scmp.eq.s32.totalorder %s26, 1
      %p110 = por %p108, %p109
      %p111 = scmp.ne.s32.totalorder %s100, %s101
      %p112 = scmp.eq.s32.totalorder %s26, 0
      %p113 = por %p111, %p112
      %p114 = scmp.ne.s32.totalorder %s100, %s101
      %p115 = scmp.eq.s32.totalorder %s27, 1
      %p116 = por %p114, %p115
      %p118 = scmp.ne.s32.totalorder %s101, %s117
      %p119 = scmp.eq.s32.totalorder %s27, 0
      %p120 = por %p118, %p119
      %s121 = ssub.s32 %s28, %s40
      %s122 = ssub.s32 %s29, %s36
      %s123 = sor.u32 %s121, %s122
      %p124 = scmp.eq.s32.totalorder %s123, 0
      %s126 = sadd.s32 %s125, 1
      %s127 = scalar_select %p124, %s125, %s126
      %p130 = pneg %p124
      %p131 = scmp.eq.s32.totalorder %s21, 1
      %p132 = por %p130, %p131
      %p133 = scmp.ne.s32.totalorder %s125, %s128
      %p134 = scmp.eq.s32.totalorder %s21, 0
      %p135 = por %p133, %p134
      %p136 = scmp.ne.s32.totalorder %s125, %s128
      %p137 = scmp.eq.s32.totalorder %s26, 1
      %p138 = por %p136, %p137
      %p139 = scmp.ne.s32.totalorder %s128, %s129
      %p140 = scmp.eq.s32.totalorder %s26, 0
      %p141 = por %p139, %p140
      %p142 = scmp.ne.s32.totalorder %s128, %s129
      %p143 = scmp.eq.s32.totalorder %s27, 1
      %p144 = por %p142, %p143
      %p146 = scmp.ne.s32.totalorder %s129, %s145
      %p147 = scmp.eq.s32.totalorder %s27, 0
      %p148 = por %p146, %p147
      %s149 = ssub.s32 %s28, %s40
      %s150 = ssub.s32 %s29, %s36
      %s151 = sor.u32 %s149, %s150
      %p152 = scmp.eq.s32.totalorder %s151, 0
      %s154 = sadd.s32 %s153, 1
      %s155 = scalar_select %p152, %s153, %s154
      %p158 = pneg %p152
      %p159 = scmp.eq.s32.totalorder %s21, 1
      %p160 = por %p158, %p159
      %p161 = scmp.ne.s32.totalorder %s153, %s156
      %p162 = scmp.eq.s32.totalorder %s21, 0
      %p163 = por %p161, %p162
      %p164 = scmp.ne.s32.totalorder %s153, %s156
      %p165 = scmp.eq.s32.totalorder %s26, 1
      %p166 = por %p164, %p165
      %p167 = scmp.ne.s32.totalorder %s156, %s157
      %p168 = scmp.eq.s32.totalorder %s26, 0
      %p169 = por %p167, %p168
      %p170 = scmp.ne.s32.totalorder %s156, %s157
      %p171 = scmp.eq.s32.totalorder %s27, 1
      %p172 = por %p170, %p171
      %p174 = scmp.ne.s32.totalorder %s157, %s173
      %p175 = scmp.eq.s32.totalorder %s27, 0
      %p176 = por %p174, %p175
      %s177 = ssub.s32 %s28, %s40
      %s178 = ssub.s32 %s29, %s36
      %s179 = sor.u32 %s177, %s178
      %p180 = scmp.eq.s32.totalorder %s179, 0
      %s182 = sadd.s32 %s181, 1
      %s183 = scalar_select %p180, %s181, %s182
      %p186 = pneg %p180
      %p187 = scmp.eq.s32.totalorder %s21, 1
      %p188 = por %p186, %p187
      %p189 = scmp.ne.s32.totalorder %s181, %s184
      %p190 = scmp.eq.s32.totalorder %s21, 0
      %p191 = por %p189, %p190
      %p192 = scmp.ne.s32.totalorder %s181, %s184
      %p193 = scmp.eq.s32.totalorder %s26, 1
      %p194 = por %p192, %p193
      %p195 = scmp.ne.s32.totalorder %s184, %s185
      %p196 = scmp.eq.s32.totalorder %s26, 0
      %p197 = por %p195, %p196
      %p198 = scmp.ne.s32.totalorder %s184, %s185
      %p199 = scmp.eq.s32.totalorder %s27, 1
      %p200 = por %p198, %p199
      %p202 = scmp.ne.s32.totalorder %s185, %s201
      %p203 = scmp.eq.s32.totalorder %s27, 0
      %p204 = por %p202, %p203
      %p205 = scmp.le.s32.totalorder 1, %s21
      %p206 = scmp.lt.s32.totalorder %s21, 3
      %p207 = pnand %p205, %p206
      %p208 = pneg %p207
      // Predicated region
      $region9: #{tpu_custom_call.1} parent=5 // pred_check
        _
      $region10: #{tpu_custom_call.1} parent=5 // pred_check_branch
        %210 = sbr.rel (%p207) target = $region12
      $region11: #{tpu_custom_call.1} parent=5 // pred_region
        %s211 = ssub.s32 %s21, 1
      $region12: #{tpu_custom_call.1} parent=5 // pred_fallthru
        _
      %p212 = scmp.lt.s32.totalorder %s21, 2
      // Predicated region
      $region13: #{tpu_custom_call.1} parent=5 // pred_check
        %p213 = pneg %p212
      $region14: #{tpu_custom_call.1} parent=5 // pred_check_branch
        %215 = sbr.rel (%p213) target = $region16
      $region15: #{tpu_custom_call.1} parent=5 // pred_region
        // Predicated region
        $region17: #{tpu_custom_call.1} parent=15 // pred_check
          %p216 = pneg %p55
        $region18: #{tpu_custom_call.1} parent=15 // pred_check_branch
          %218 = sbr.rel (%p216) target = $region20
        $region19: #{tpu_custom_call.1} parent=15 // pred_region
          %s219 = smul.u32 4, %s29
          %p220 = scmp.lt.s32.totalorder %s28, 1
          %s221 = scalar_select %p220, %s28, 1
          %p222 = scmp.lt.s32.totalorder %s219, 3
          %s223 = scalar_select %p222, %s219, 3
          %s224 = smul.addr %s221, 4
          %s225 = sadd.s32 %s223, %s224
          %s226 = smul.addr %s225, 8
          %s227 = scalar_lea.vmem %s0, %s226
          %s228 = smul.u32 4, %s29
        $region20: #{tpu_custom_call.1} parent=15 // pred_fallthru
          _
        // Predicated region
        $region21: #{tpu_custom_call.1} parent=15 // pred_check
          %p229 = pneg %p81
        $region22: #{tpu_custom_call.1} parent=15 // pred_check_branch
          %231 = sbr.rel (%p229) target = $region24
        $region23: #{tpu_custom_call.1} parent=15 // pred_region
          %p232 = scmp.lt.s32.totalorder %s28, 1
          %s233 = scalar_select %p232, %s28, 1
          %s234 = smul.addr %s233, 16
          %s235 = smul.addr %s234, 8
          %s236 = scalar_lea.vmem %s1, %s235
        $region24: #{tpu_custom_call.1} parent=15 // pred_fallthru
          _
        // Predicated region
        $region25: #{tpu_custom_call.1} parent=15 // pred_check
          %p237 = pneg %p107
        $region26: #{tpu_custom_call.1} parent=15 // pred_check_branch
          %239 = sbr.rel (%p237) target = $region28
        $region27: #{tpu_custom_call.1} parent=15 // pred_region
          %p240 = scmp.lt.s32.totalorder %s28, 1
          %s241 = scalar_select %p240, %s28, 1
          %s242 = smul.addr %s241, 16
          %s243 = smul.addr %s242, 8
          %s244 = scalar_lea.vmem %s2, %s243
        $region28: #{tpu_custom_call.1} parent=15 // pred_fallthru
          _
        // Predicated region
        $region29: #{tpu_custom_call.1} parent=15 // pred_check
          %p245 = pneg %p135
        $region30: #{tpu_custom_call.1} parent=15 // pred_check_branch
          %247 = sbr.rel (%p245) target = $region32
        $region31: #{tpu_custom_call.1} parent=15 // pred_region
          %s248 = sand.u32 %s125, 1
          %s249 = scalar_lea.sflag [#allocation3], %s248
          %s250 = sand.u32 %s125, 1
          %s251 = smul.addr %s250, 8
          %s252 = scalar_lea.vmem [#allocation2], %s251
          %s254 = ssub.s32 128, 128
          %255 = vsyncadd %s249, %s254
          %s256 = sadd.s32 %s29, %s28
          %s257 = smul.addr %s256, 128
          %s258 = scalar_lea.hbm %s3, %s257
          %s260 = sshll.u32 %s252, 4
          %s261 = int_to_ptr.vmem [resolvable:$true] %s260
          %263 = dma.hbm_to_vmem [thread:$0]  %s258, 128, %s261, %s249
        $region32: #{tpu_custom_call.1} parent=15 // pred_fallthru
          _
      $region16: #{tpu_custom_call.1} parent=5 // pred_fallthru
        _
      %p264 = scmp.le.s32.totalorder 1, %s21
      %p265 = scmp.lt.s32.totalorder %s21, 3
      %p266 = pnand %p264, %p265
      %p267 = pneg %p266
      // Predicated region
      $region33: #{tpu_custom_call.1} parent=5 // pred_check
        _
      $region34: #{tpu_custom_call.1} parent=5 // pred_check_branch
        %269 = sbr.rel (%p266) target = $region36
      $region35: #{tpu_custom_call.1} parent=5 // pred_region
        %s270 = ssub.s32 %s21, 1
        %s271 = sand.u32 %s128, 1
        %s272 = scalar_lea.sflag [#allocation3], %s271
        %s273 = sand.u32 %s128, 1
        %s274 = smul.addr %s273, 8
        %s275 = scalar_lea.vmem [#allocation2], %s274
        // Predicated region
        $region37: #{tpu_custom_call.1} parent=35 // pred_check
          %p276 = pneg %p141
        $region38: #{tpu_custom_call.1} parent=35 // pred_check_branch
          %278 = sbr.rel (%p276) target = $region40
        $region39: #{tpu_custom_call.1} parent=35 // pred_region
          %279 = dma.done %s272, 128
        $region40: #{tpu_custom_call.1} parent=35 // pred_fallthru
          _
        %s280 = smul.u32 4, %s31
        %p281 = scmp.lt.s32.totalorder %s30, 1
        %s282 = scalar_select %p281, %s30, 1
        %p283 = scmp.lt.s32.totalorder %s280, 3
        %s284 = scalar_select %p283, %s280, 3
        %s285 = smul.addr %s282, 4
        %s286 = sadd.s32 %s284, %s285
        %s287 = smul.addr %s286, 8
        %s288 = scalar_lea.vmem %s0, %s287
        %p289 = pneg %p61
        %p290 = pneg %p58
        %p291 = scmp.lt.s32.totalorder %s30, 1
        %s292 = scalar_select %p291, %s30, 1
        %s293 = smul.addr %s292, 16
        %s294 = smul.addr %s293, 8
        %s295 = scalar_lea.vmem %s1, %s294
        %p296 = pneg %p87
        %p297 = pneg %p84
        %p298 = scmp.lt.s32.totalorder %s30, 1
        %s299 = scalar_select %p298, %s30, 1
        %s300 = smul.addr %s299, 16
        %s301 = smul.addr %s300, 8
        %s302 = scalar_lea.vmem %s2, %s301
        %p303 = pneg %p113
        %p304 = pneg %p110
        %s305 = sand.u32 %s128, 1
        %s306 = scalar_lea.sflag [#allocation3], %s305
        %s307 = sand.u32 %s128, 1
        %s308 = smul.addr %s307, 8
        %s309 = scalar_lea.vmem [#allocation2], %s308
        %p310 = pneg %p141
        %p311 = pneg %p138
        %p312 = pneg %p169
        %p313 = pneg %p166
        %s314 = sand.u32 %s156, 1
        %s315 = scalar_lea.sflag [#allocation4], %s314
        %s316 = sand.u32 %s156, 1
        %s317 = smul.addr %s316, 32
        %s318 = scalar_lea.vmem [#allocation5], %s317
        %p319 = pneg %p197
        %p320 = pneg %p194
        %s321 = sand.u32 %s184, 1
        %s322 = scalar_lea.sflag [#allocation7], %s321
        %s323 = sand.u32 %s184, 1
        %s324 = smul.addr %s323, 32
        %s325 = scalar_lea.vmem [#allocation6], %s324
        %s326 = smul.u32 4, %s31
        %p327 = scmp.lt.s32.totalorder %s30, 1
        %s328 = scalar_select %p327, %s30, 1
        %p329 = scmp.lt.s32.totalorder %s326, 3
        %s330 = scalar_select %p329, %s326, 3
        %s331 = smul.addr %s328, 4
        %s332 = sadd.s32 %s330, %s331
        %s333 = smul.addr %s332, 8
        %s334 = scalar_lea.vmem %s0, %s333
        %s335 = smul.u32 4, %s31
        %p336 = scmp.lt.s32.totalorder %s30, 1
        %s337 = scalar_select %p336, %s30, 1
        %s338 = smul.addr %s337, 16
        %s339 = smul.addr %s338, 8
        %s340 = scalar_lea.vmem %s1, %s339
        %p341 = scmp.lt.s32.totalorder %s30, 1
        %s342 = scalar_select %p341, %s30, 1
        %s343 = smul.addr %s342, 16
        %s344 = smul.addr %s343, 8
        %s345 = scalar_lea.vmem %s2, %s344
        %s346 = smul.u32 4, %s31
        %s347 = smul.u32 4, %s31
        %v350 = vld [vmem:[%s334] sm:$0xff]
        %v351 = vld [vmem:[%s334 + $0x8] sm:$0xff]
        %v352 = vld [vmem:[%s334 + $0x10] sm:$0xff]
        %v353 = vld [vmem:[%s334 + $0x18] sm:$0xff]
        %v354 = vmul.f32 %v350, 0.17677669
        %v355 = vmul.f32 %v351, 0.17677669
        %v356 = vmul.f32 %v352, 0.17677669
        %v357 = vmul.f32 %v353, 0.17677669
        %v358 = vld [vmem:[%s340] sm:$0xff]
        %v359 = vld [vmem:[%s340 + $0x8] sm:$0xff]
        %v360 = vld [vmem:[%s340 + $0x10] sm:$0xff]
        %v361 = vld [vmem:[%s340 + $0x18] sm:$0xff]
        %v362 = vld [vmem:[%s340 + $0x20] sm:$0xff]
        %v363 = vld [vmem:[%s340 + $0x28] sm:$0xff]
        %v364 = vld [vmem:[%s340 + $0x30] sm:$0xff]
        %v365 = vld [vmem:[%s340 + $0x38] sm:$0xff]
        %v366 = vld [vmem:[%s340 + $0x40] sm:$0xff]
        %v367 = vld [vmem:[%s340 + $0x48] sm:$0xff]
        %v368 = vld [vmem:[%s340 + $0x50] sm:$0xff]
        %v369 = vld [vmem:[%s340 + $0x58] sm:$0xff]
        %v370 = vld [vmem:[%s340 + $0x60] sm:$0xff]
        %v371 = vld [vmem:[%s340 + $0x68] sm:$0xff]
        %v372 = vld [vmem:[%s340 + $0x70] sm:$0xff]
        %v373 = vld [vmem:[%s340 + $0x78] sm:$0xff]
        %v374 = vld [vmem:[%s345] sm:$0xff]
        %v375 = vld [vmem:[%s345 + $0x8] sm:$0xff]
        %v376 = vld [vmem:[%s345 + $0x10] sm:$0xff]
        %v377 = vld [vmem:[%s345 + $0x18] sm:$0xff]
        %v378 = vld [vmem:[%s345 + $0x20] sm:$0xff]
        %v379 = vld [vmem:[%s345 + $0x28] sm:$0xff]
        %v380 = vld [vmem:[%s345 + $0x30] sm:$0xff]
        %v381 = vld [vmem:[%s345 + $0x38] sm:$0xff]
        %v382 = vld [vmem:[%s345 + $0x40] sm:$0xff]
        %v383 = vld [vmem:[%s345 + $0x48] sm:$0xff]
        %v384 = vld [vmem:[%s345 + $0x50] sm:$0xff]
        %v385 = vld [vmem:[%s345 + $0x58] sm:$0xff]
        %v386 = vld [vmem:[%s345 + $0x60] sm:$0xff]
        %v387 = vld [vmem:[%s345 + $0x68] sm:$0xff]
        %v388 = vld [vmem:[%s345 + $0x70] sm:$0xff]
        %v389 = vld [vmem:[%s345 + $0x78] sm:$0xff]
        %v390 = vld [vmem:[%s275] sm:$0xff]
        %vm391 = vcmask 261120
        %v393 = vsel %vm391, %v354, 0
        %v396 = vsel %vm391, %v355, 0
        %v399 = vsel %vm391, %v356, 0
        %v402 = vsel %vm391, %v357, 0
        %v405 = vsel %vm391, %v358, 0
        %v408 = vsel %vm391, %v359, 0
        %v411 = vsel %vm391, %v360, 0
        %v414 = vsel %vm391, %v361, 0
        %v417 = vsel %vm391, %v362, 0
        %v420 = vsel %vm391, %v363, 0
        %v423 = vsel %vm391, %v364, 0
        %v426 = vsel %vm391, %v365, 0
        %v429 = vsel %vm391, %v366, 0
        %v432 = vsel %vm391, %v367, 0
        %v435 = vsel %vm391, %v368, 0
        %v438 = vsel %vm391, %v369, 0
        %v441 = vsel %vm391, %v370, 0
        %v444 = vsel %vm391, %v371, 0
        %v447 = vsel %vm391, %v372, 0
        %v450 = vsel %vm391, %v373, 0
        %452 = vmatprep.subr.mxu0 0.0
        %453 = vmatpush1.xpose.msra.mxu0 %v405
        %454 = vmatprep.subr.mxu0 0.0
        %455 = vmatpush1.xpose.msra.mxu0 %v408
        %456 = vmatprep.subr.mxu0 0.0
        %457 = vmatpush1.xpose.msra.mxu0 %v411
        %458 = vmatprep.subr.mxu0 0.0
        %459 = vmatpush1.xpose.msra.mxu0 %v414
        %460 = vmatprep.subr.mxu0 0.0
        %461 = vmatpush1.xpose.msra.mxu0 %v417
        %462 = vmatprep.subr.mxu0 0.0
        %463 = vmatpush1.xpose.msra.mxu0 %v420
        %464 = vmatprep.subr.mxu0 0.0
        %465 = vmatpush1.xpose.msra.mxu0 %v423
        %466 = vmatprep.subr.mxu0 0.0
        %467 = vmatpush1.xpose.msra.mxu0 %v426
        %468 = vmatprep.subr.mxu0 0.0
        %469 = vmatpush1.xpose.msra.mxu0 %v429
        %470 = vmatprep.subr.mxu0 0.0
        %471 = vmatpush1.xpose.msra.mxu0 %v432
        %472 = vmatprep.subr.mxu0 0.0
        %473 = vmatpush1.xpose.msra.mxu0 %v435
        %474 = vmatprep.subr.mxu0 0.0
        %475 = vmatpush1.xpose.msra.mxu0 %v438
        %476 = vmatprep.subr.mxu0 0.0
        %477 = vmatpush1.xpose.msra.mxu0 %v441
        %478 = vmatprep.subr.mxu0 0.0
        %479 = vmatpush1.xpose.msra.mxu0 %v444
        %480 = vmatprep.subr.mxu0 0.0
        %481 = vmatpush1.xpose.msra.mxu0 %v447
        %482 = vmatprep.subr.mxu0 0.0
        %483 = vmatpush1.xpose.msra.mxu0 %v450
        %484 = vmatprep.subr.mxu0 0.0
        %485 = vmatpush1.xpose.msra.mxu0 0.0
        %486 = vmatprep.subr.mxu0 0.0
        %487 = vmatpush1.xpose.msra.mxu0 0.0
        %488 = vmatprep.subr.mxu0 0.0
        %489 = vmatpush1.xpose.msra.mxu0 0.0
        %490 = vmatprep.subr.mxu0 0.0
        %491 = vmatpush1.xpose.msra.mxu0 0.0
        %492 = vmatprep.subr.mxu0 0.0
        %493 = vmatpush1.xpose.msra.mxu0 0.0
        %494 = vmatprep.subr.mxu0 0.0
        %495 = vmatpush1.xpose.msra.mxu0 0.0
        %496 = vmatprep.subr.mxu0 0.0
        %497 = vmatpush1.xpose.msra.mxu0 0.0
        %498 = vmatprep.subr.mxu0 0.0
        %499 = vmatpush1.xpose.msra.mxu0 0.0
        %500 = vmatprep.subr.mxu0 0.0
        %501 = vmatpush1.xpose.msra.mxu0 0.0
        %502 = vmatprep.subr.mxu0 0.0
        %503 = vmatpush1.xpose.msra.mxu0 0.0
        %504 = vmatprep.subr.mxu0 0.0
        %505 = vmatpush1.xpose.msra.mxu0 0.0
        %506 = vmatprep.subr.mxu0 0.0
        %507 = vmatpush1.xpose.msra.mxu0 0.0
        %508 = vmatprep.subr.mxu0 0.0
        %509 = vmatpush1.xpose.msra.mxu0 0.0
        %510 = vmatprep.subr.mxu0 0.0
        %511 = vmatpush1.xpose.msra.mxu0 0.0
        %512 = vmatprep.subr.mxu0 0.0
        %513 = vmatpush1.xpose.msra.mxu0 0.0
        %514 = vmatprep.subr.mxu0 0.0
        %515 = vmatpush1.xpose.msra.mxu0 0.0
        %516 = vmatprep.mubr.f32.mxu0 0.0
        %517 = vmatmul.mubr.f32.gmra.mrb[0].mxu0 %v393
        %v518 = vpop.f32.mrb[0].mxu0
        %v519 = vadd.f32 0.0, %v518
        %v520 = vpop.f32.mrb[0].mxu0
        %521 = vmatprep.mubr.f32.mxu0 0.0
        %522 = vmatmul.mubr.f32.gmra.mrb[0].mxu0 %v396
        %v523 = vpop.f32.mrb[0].mxu0
        %v524 = vadd.f32 0.0, %v523
        %v525 = vpop.f32.mrb[0].mxu0
        %526 = vmatprep.mubr.f32.mxu0 0.0
        %527 = vmatmul.mubr.f32.gmra.mrb[0].mxu0 %v399
        %v528 = vpop.f32.mrb[0].mxu0
        %v529 = vadd.f32 0.0, %v528
        %v530 = vpop.f32.mrb[0].mxu0
        %531 = vmatprep.mubr.f32.mxu0 0.0
        %532 = vmatmul.mubr.f32.gmra.mrb[0].mxu0 %v402
        %v533 = vpop.f32.mrb[0].mxu0
        %v534 = vadd.f32 0.0, %v533
        %v535 = vpop.f32.mrb[0].mxu0
        %536 = vdwg.mxu0
        %vm537 = vnez %v390
        %v538 = vsel %vm537, 16843009, 0
        %v539 = vunpack.c.0.s8 %v538
        %v540 = vunpack.c.1.s8 %v538
        %v541 = vunpack.c.2.s8 %v538
        %v542 = vunpack.c.3.s8 %v538
        %v543 = vpack.c.b16 %v539, %v539
        %v544 = vpack.c.b8 %v543, %v543
        %v545 = vpack.c.b16 %v540, %v540
        %v546 = vpack.c.b8 %v545, %v545
        %v547 = vpack.c.b16 %v541, %v541
        %v548 = vpack.c.b8 %v547, %v547
        %v549 = vpack.c.b16 %v542, %v542
        %v550 = vpack.c.b8 %v549, %v549
        %vm551 = vnez %v544
        %vm552 = vnez %v546
        %vm553 = vnez %v548
        %vm554 = vnez %v550
        %v555 = vsel %vm551, 16843009, 0
        %v556 = vsel %vm552, 16843009, 0
        %v557 = vsel %vm553, 16843009, 0
        %v558 = vsel %vm554, 16843009, 0
        %v559 = vunpack.c.0.s8 %v555
        %v560 = vunpack.c.0.s8 %v556
        %v561 = vunpack.c.0.s8 %v557
        %v562 = vunpack.c.0.s8 %v558
        %vm563 = vcmp.ne.s32.totalorder %v559, 0
        %vm564 = vcmp.ne.s32.totalorder %v560, 0
        %vm565 = vcmp.ne.s32.totalorder %v561, 0
        %vm566 = vcmp.ne.s32.totalorder %v562, 0
        %v567 = vsel %vm563, -inf, %v519
        %v568 = vsel %vm564, -inf, %v524
        %v569 = vsel %vm565, -inf, %v529
        %v570 = vsel %vm566, -inf, %v534
        %571 = vmax.xlane.f32.xlu0 %v567
        %v572 = vpop.xlane.xlu0 %571
        %573 = vmax.xlane.f32.xlu0 %v568
        %v574 = vpop.xlane.xlu0 %573
        %575 = vmax.xlane.f32.xlu0 %v569
        %v576 = vpop.xlane.xlu0 %575
        %577 = vmax.xlane.f32.xlu0 %v570
        %v578 = vpop.xlane.xlu0 %577
        %vm579 = vcmp.eq.f32.partialorder %v572, -inf
        %vm580 = vcmp.eq.f32.partialorder %v574, -inf
        %vm581 = vcmp.eq.f32.partialorder %v576, -inf
        %vm582 = vcmp.eq.f32.partialorder %v578, -inf
        %v583 = vsel %vm579, 0.0, %v572
        %v584 = vsel %vm580, 0.0, %v574
        %v585 = vsel %vm581, 0.0, %v576
        %v586 = vsel %vm582, 0.0, %v578
        %v587 = vsub.f32 %v567, %v583
        %v588 = vsub.f32 %v568, %v584
        %v589 = vsub.f32 %v569, %v585
        %v590 = vsub.f32 %v570, %v586
        %v591 = vmul.f32 %v587, 1.442695
        %v592 = vpow.pop %v591
        %v593 = vmul.f32 %v588, 1.442695
        %v594 = vpow.pop %v593
        %v595 = vmul.f32 %v589, 1.442695
        %v596 = vpow.pop %v595
        %v597 = vmul.f32 %v590, 1.442695
        %v598 = vpow.pop %v597
        %599 = vadd.xlane.f32.xlu0 %v592
        %v600 = vpop.xlane.xlu0 %599
        %601 = vadd.xlane.f32.xlu0 %v594
        %v602 = vpop.xlane.xlu0 %601
        %603 = vadd.xlane.f32.xlu0 %v596
        %v604 = vpop.xlane.xlu0 %603
        %605 = vadd.xlane.f32.xlu0 %v598
        %v606 = vpop.xlane.xlu0 %605
        %v607 = vsel %vm579, 1.0, %v600
        %v608 = vsel %vm580, 1.0, %v602
        %v609 = vsel %vm581, 1.0, %v604
        %v610 = vsel %vm582, 1.0, %v606
        %v611 = vrcp.pop %v607
        %v612 = vrcp.pop %v608
        %v613 = vrcp.pop %v609
        %v614 = vrcp.pop %v610
        %v615 = vmul.f32 %v592, %v611
        %v616 = vmul.f32 %v594, %v612
        %v617 = vmul.f32 %v596, %v613
        %v618 = vmul.f32 %v598, %v614
        %619 = vmatprep.subr.mxu0 0.0
        %620 = vmatpush1.msra.mxu0 %v374
        %621 = vmatprep.subr.mxu0 0.0
        %622 = vmatpush1.msra.mxu0 %v375
        %623 = vmatprep.subr.mxu0 0.0
        %624 = vmatpush1.msra.mxu0 %v376
        %625 = vmatprep.subr.mxu0 0.0
        %626 = vmatpush1.msra.mxu0 %v377
        %627 = vmatprep.subr.mxu0 0.0
        %628 = vmatpush1.msra.mxu0 %v378
        %629 = vmatprep.subr.mxu0 0.0
        %630 = vmatpush1.msra.mxu0 %v379
        %631 = vmatprep.subr.mxu0 0.0
        %632 = vmatpush1.msra.mxu0 %v380
        %633 = vmatprep.subr.mxu0 0.0
        %634 = vmatpush1.msra.mxu0 %v381
        %635 = vmatprep.subr.mxu0 0.0
        %636 = vmatpush1.msra.mxu0 %v382
        %637 = vmatprep.subr.mxu0 0.0
        %638 = vmatpush1.msra.mxu0 %v383
        %639 = vmatprep.subr.mxu0 0.0
        %640 = vmatpush1.msra.mxu0 %v384
        %641 = vmatprep.subr.mxu0 0.0
        %642 = vmatpush1.msra.mxu0 %v385
        %643 = vmatprep.subr.mxu0 0.0
        %644 = vmatpush1.msra.mxu0 %v386
        %645 = vmatprep.subr.mxu0 0.0
        %646 = vmatpush1.msra.mxu0 %v387
        %647 = vmatprep.subr.mxu0 0.0
        %648 = vmatpush1.msra.mxu0 %v388
        %649 = vmatprep.subr.mxu0 0.0
        %650 = vmatpush1.msra.mxu0 %v389
        %651 = vmatprep.subr.mxu0 0.0
        %652 = vmatpush1.msra.mxu0 0.0
        %653 = vmatprep.subr.mxu0 0.0
        %654 = vmatpush1.msra.mxu0 0.0
        %655 = vmatprep.subr.mxu0 0.0
        %656 = vmatpush1.msra.mxu0 0.0
        %657 = vmatprep.subr.mxu0 0.0
        %658 = vmatpush1.msra.mxu0 0.0
        %659 = vmatprep.subr.mxu0 0.0
        %660 = vmatpush1.msra.mxu0 0.0
        %661 = vmatprep.subr.mxu0 0.0
        %662 = vmatpush1.msra.mxu0 0.0
        %663 = vmatprep.subr.mxu0 0.0
        %664 = vmatpush1.msra.mxu0 0.0
        %665 = vmatprep.subr.mxu0 0.0
        %666 = vmatpush1.msra.mxu0 0.0
        %667 = vmatprep.subr.mxu0 0.0
        %668 = vmatpush1.msra.mxu0 0.0
        %669 = vmatprep.subr.mxu0 0.0
        %670 = vmatpush1.msra.mxu0 0.0
        %671 = vmatprep.subr.mxu0 0.0
        %672 = vmatpush1.msra.mxu0 0.0
        %673 = vmatprep.subr.mxu0 0.0
        %674 = vmatpush1.msra.mxu0 0.0
        %675 = vmatprep.subr.mxu0 0.0
        %676 = vmatpush1.msra.mxu0 0.0
        %677 = vmatprep.subr.mxu0 0.0
        %678 = vmatpush1.msra.mxu0 0.0
        %679 = vmatprep.subr.mxu0 0.0
        %680 = vmatpush1.msra.mxu0 0.0
        %681 = vmatprep.subr.mxu0 0.0
        %682 = vmatpush1.msra.mxu0 0.0
        %683 = vmatprep.mubr.f32.mxu0 0.0
        %684 = vmatmul.mubr.f32.gmra.mrb[0].mxu0 %v615
        %v685 = vpop.f32.mrb[0].mxu0
        %v686 = vadd.f32 0.0, %v685
        %v687 = vpop.f32.mrb[0].mxu0
        %688 = vmatprep.mubr.f32.mxu0 0.0
        %689 = vmatmul.mubr.f32.gmra.mrb[0].mxu0 %v616
        %v690 = vpop.f32.mrb[0].mxu0
        %v691 = vadd.f32 0.0, %v690
        %v692 = vpop.f32.mrb[0].mxu0
        %693 = vmatprep.mubr.f32.mxu0 0.0
        %694 = vmatmul.mubr.f32.gmra.mrb[0].mxu0 %v617
        %v695 = vpop.f32.mrb[0].mxu0
        %v696 = vadd.f32 0.0, %v695
        %v697 = vpop.f32.mrb[0].mxu0
        %698 = vmatprep.mubr.f32.mxu0 0.0
        %699 = vmatmul.mubr.f32.gmra.mrb[0].mxu0 %v618
        %v700 = vpop.f32.mrb[0].mxu0
        %v701 = vadd.f32 0.0, %v700
        %v702 = vpop.f32.mrb[0].mxu0
        %703 = vdwg.mxu0
        %704 = vst [vmem:[%s318] sm:$0xff] %v686
        %705 = vst [vmem:[%s318 + $0x8] sm:$0xff] %v691
        %706 = vst [vmem:[%s318 + $0x10] sm:$0xff] %v696
        %707 = vst [vmem:[%s318 + $0x18] sm:$0xff] %v701
        %708 = vst [vmem:[%s325] sm:$0xff] %v615
        %709 = vst [vmem:[%s325 + $0x8] sm:$0xff] %v616
        %710 = vst [vmem:[%s325 + $0x10] sm:$0xff] %v617
        %711 = vst [vmem:[%s325 + $0x18] sm:$0xff] %v618
        %s712 = sand.u32 %s156, 1
        %s713 = scalar_lea.sflag [#allocation4], %s712
        %s714 = sand.u32 %s156, 1
        %s715 = smul.addr %s714, 32
        %s716 = scalar_lea.vmem [#allocation5], %s715
        %s717 = sand.u32 %s184, 1
        %s718 = scalar_lea.sflag [#allocation7], %s717
        %s719 = sand.u32 %s184, 1
        %s720 = smul.addr %s719, 32
        %s721 = scalar_lea.vmem [#allocation6], %s720
        // Predicated region
        $region41: #{tpu_custom_call.1} parent=35 // pred_check
          %p722 = pneg %p166
        $region42: #{tpu_custom_call.1} parent=35 // pred_check_branch
          %724 = sbr.rel (%p722) target = $region44
        $region43: #{tpu_custom_call.1} parent=35 // pred_region
          %s725 = smul.u32 4, %s31
          %s727 = ssub.s32 512, 512
          %728 = vsyncadd %s713, %s727
          %s729 = smul.addr %s30, 4
          %s730 = sadd.s32 %s725, %s729
          %s731 = smul.addr %s730, 128
          %s732 = scalar_lea.hbm %s4, %s731
          %s733 = sshll.u32 %s716, 4
          %s734 = int_to_ptr.vmem [resolvable:$true] %s733
          %739 = dma.vmem_to_hbm [thread:$0]  %s734, 512, %s732, %s713, 128, 128, 8
        $region44: #{tpu_custom_call.1} parent=35 // pred_fallthru
          _
        // Predicated region
        $region45: #{tpu_custom_call.1} parent=35 // pred_check
          %p740 = pneg %p194
        $region46: #{tpu_custom_call.1} parent=35 // pred_check_branch
          %742 = sbr.rel (%p740) target = $region48
        $region47: #{tpu_custom_call.1} parent=35 // pred_region
          %s743 = smul.u32 4, %s31
          %s745 = ssub.s32 512, 512
          %746 = vsyncadd %s718, %s745
          %s747 = smul.addr %s30, 4
          %s748 = sadd.s32 %s743, %s747
          %s749 = smul.addr %s748, 128
          %s750 = scalar_lea.hbm %s5, %s749
          %s751 = sshll.u32 %s721, 4
          %s752 = int_to_ptr.vmem [resolvable:$true] %s751
          %757 = dma.vmem_to_hbm [thread:$0]  %s752, 512, %s750, %s718, 128, 128, 8
        $region48: #{tpu_custom_call.1} parent=35 // pred_fallthru
          _
      $region36: #{tpu_custom_call.1} parent=5 // pred_fallthru
        _
      %p758 = scmp.le.s32.totalorder 2, %s21
      // Predicated region
      $region49: #{tpu_custom_call.1} parent=5 // pred_check
        %p759 = pneg %p758
      $region50: #{tpu_custom_call.1} parent=5 // pred_check_branch
        %761 = sbr.rel (%p759) target = $region52
      $region51: #{tpu_custom_call.1} parent=5 // pred_region
        %s762 = ssub.s32 %s21, 2
        // Predicated region
        $region53: #{tpu_custom_call.1} parent=51 // pred_check
          %p763 = pneg %p172
        $region54: #{tpu_custom_call.1} parent=51 // pred_check_branch
          %765 = sbr.rel (%p763) target = $region56
        $region55: #{tpu_custom_call.1} parent=51 // pred_region
          %s766 = sand.u32 %s157, 1
          %s767 = scalar_lea.sflag [#allocation4], %s766
          %s768 = sand.u32 %s157, 1
          %s769 = smul.addr %s768, 32
          %s770 = scalar_lea.vmem [#allocation5], %s769
          %771 = dma.done %s767, 512
        $region56: #{tpu_custom_call.1} parent=51 // pred_fallthru
          _
        // Predicated region
        $region57: #{tpu_custom_call.1} parent=51 // pred_check
          %p772 = pneg %p200
        $region58: #{tpu_custom_call.1} parent=51 // pred_check_branch
          %774 = sbr.rel (%p772) target = $region60
        $region59: #{tpu_custom_call.1} parent=51 // pred_region
          %s775 = sand.u32 %s185, 1
          %s776 = scalar_lea.sflag [#allocation7], %s775
          %s777 = sand.u32 %s185, 1
          %s778 = smul.addr %s777, 32
          %s779 = scalar_lea.vmem [#allocation6], %s778
          %780 = dma.done %s776, 512
        $region60: #{tpu_custom_call.1} parent=51 // pred_fallthru
          _
      $region52: #{tpu_custom_call.1} parent=5 // pred_fallthru
        _
    $region6: #{tpu_custom_call.1} parent=1 // loop_footer
      %s25 = sadd.s32 1, %s21
    $region7: #{tpu_custom_call.1} parent=1 // loop_footer_branch
      %20 = sbr.rel target = $region3
    $region8: #{tpu_custom_call.1} parent=1 // loop_exit
      _
    %781 = vsyncpa [#allocation3], 1
    %s782 = scalar_lea.sflag [#allocation3], 1
    %783 = vsyncpa %s782, 1
    %784 = vsyncpa [#allocation4], 1
    %s785 = scalar_lea.sflag [#allocation4], 1
    %786 = vsyncpa %s785, 1
    %787 = vsyncpa [#allocation7], 1
    %s788 = scalar_lea.sflag [#allocation7], 1
    %789 = vsyncpa %s788, 1

</llo_original>
